<compile_context>
chip_gen: v7x
topology: tpu7x:2x2x1
jax: 0.10.0
libtpu: 0.0.40
codegen_flags: <defaults>
</compile_context>

<pallas_src>
import jax
import jax.numpy as jnp
from jax.experimental import pallas as pl
from jax.experimental.pallas import tpu as pltpu


_TARGET_TILE_BYTES = 2 * 1024 * 1024   # per-array tile size target


def _modality_audio_kernel(total_ref, vis_ref, aud_ref, out_ref):
    # Fused VPU elementwise: 0.5 * (total - audio + visual)
    out_ref[...] = 0.5 * (total_ref[...] - aud_ref[...] + vis_ref[...])


def _pick_layout(n):
    """Choose (lane, rows, tail_pad) for a lane-dense 2-D view of n elements."""
    for lane in (1024, 512, 256, 128):
        if n % lane == 0:
            return lane, n // lane, 0           # free bitcast reshape, no pad
    lane = 128                                  # fallback: pad flat tail once
    rows = pl.cdiv(n, lane)
    return lane, rows, rows * lane - n


@jax.jit
def modality_audio(total_out, pad_visual_out, pad_audio_out):
    """Pallas TPU equivalent of Modality_Audio.forward (any shape/rank)."""
    assert total_out.shape == pad_visual_out.shape == pad_audio_out.shape
    assert total_out.dtype == pad_visual_out.dtype == pad_audio_out.dtype
    orig_shape = total_out.shape
    dtype = total_out.dtype
    itemsize = jnp.dtype(dtype).itemsize

    # TODO(synk): for tiny activations (or when the three inputs are produced
    # by another kernel), fusing this op into the producer avoids one full HBM
    # round-trip of all three tensors.

    n = 1
    for d in orig_shape:
        n *= d

    lane, rows, tail_pad = _pick_layout(n)

    # Rows per tile: ~_TARGET_TILE_BYTES per array, multiple of 32 sublanes.
    tm = max(32, (_TARGET_TILE_BYTES // (lane * itemsize)) // 32 * 32)
    if tm >= rows:
        tm = rows                 # single block: full-extent dims always legal
    grid = (pl.cdiv(rows, tm),)   # ragged last block is masked by Pallas

    def _prep(x):
        flat = x.reshape(-1)
        if tail_pad:
            flat = jnp.pad(flat, (0, tail_pad))
        return flat.reshape(rows, lane)

    spec = pl.BlockSpec((tm, lane), lambda i: (i, 0))

    out2 = pl.pallas_call(
        _modality_audio_kernel,
        out_shape=jax.ShapeDtypeStruct((rows, lane), dtype),
        grid=grid,
        in_specs=[spec, spec, spec],
        out_specs=spec,
        compiler_params=pltpu.CompilerParams(
            # Row tiles are independent -> shard across TCs on v7x megacore.
            dimension_semantics=("parallel",),
            # Working set: 4 arrays x 2 MiB tile x 2 (double buffer) = 16 MiB.
            vmem_limit_bytes=48 * 1024 * 1024,
        ),
    )(_prep(total_out), _prep(pad_visual_out), _prep(pad_audio_out))

    if tail_pad:
        return out2.reshape(-1)[:n].reshape(orig_shape)
    return out2.reshape(orig_shape)


if __name__ == "__main__":
    key = jax.random.PRNGKey(0)
    k1, k2, k3 = jax.random.split(key, 3)

    # NCHW-shaped activations, as produced upstream in AVMNIST.
    shape = (2, 4, 16, 16)
    total_out = jax.random.normal(k1, shape, dtype=jnp.float32)
    pad_visual_out = jax.random.normal(k2, shape, dtype=jnp.float32)
    pad_audio_out = jax.random.normal(k3, shape, dtype=jnp.float32)

    out = modality_audio(total_out, pad_visual_out, pad_audio_out)
    out = jax.block_until_ready(out)

    # Reference check against plain JAX semantics of the PyTorch forward.
    ref = 0.5 * (total_out - pad_audio_out + pad_visual_out)
    assert out.shape == ref.shape and out.dtype == ref.dtype
    assert jnp.allclose(out, ref, atol=1e-6, rtol=1e-6)

    print("KERNEL_OK")
</pallas_src>

<mosaic_0001>
module attributes {stable_mosaic.version = 11 : i64} {
  func.func @_modality_audio_kernel(%arg0: i32, %arg1: memref<2x1024xf32, #tpu.memory_space<vmem>>, %arg2: memref<2x1024xf32, #tpu.memory_space<vmem>>, %arg3: memref<2x1024xf32, #tpu.memory_space<vmem>>, %arg4: memref<2x1024xf32, #tpu.memory_space<vmem>>) attributes {dimension_semantics = [#tpu.dimension_semantics<parallel>], iteration_bounds = array<i64: 1>, scalar_prefetch = 0 : i64, scratch_operands = 0 : i64, tpu.core_type = #tpu.core_type<tc>, window_params = [{transform_indices = @transform_0, window_bounds = array<i64: 2, 1024>}, {transform_indices = @transform_1, window_bounds = array<i64: 2, 1024>}, {transform_indices = @transform_2, window_bounds = array<i64: 2, 1024>}, {transform_indices = @transform_3, window_bounds = array<i64: 2, 1024>}]} {
    %c0 = arith.constant 0 : index
    %c0_0 = arith.constant 0 : index
    %0 = vector.load %arg1[%c0, %c0_0] : memref<2x1024xf32, #tpu.memory_space<vmem>>, vector<2x1024xf32>
    %c0_1 = arith.constant 0 : index
    %c0_2 = arith.constant 0 : index
    %1 = vector.load %arg3[%c0_1, %c0_2] : memref<2x1024xf32, #tpu.memory_space<vmem>>, vector<2x1024xf32>
    %2 = arith.subf %0, %1 : vector<2x1024xf32>
    %c0_3 = arith.constant 0 : index
    %c0_4 = arith.constant 0 : index
    %3 = vector.load %arg2[%c0_3, %c0_4] : memref<2x1024xf32, #tpu.memory_space<vmem>>, vector<2x1024xf32>
    %4 = arith.addf %2, %3 : vector<2x1024xf32>
    %cst = arith.constant 5.000000e-01 : f32
    %5 = vector.broadcast %cst : f32 to vector<2x1024xf32>
    %6 = arith.mulf %5, %4 : vector<2x1024xf32>
    %c0_5 = arith.constant 0 : index
    %c0_6 = arith.constant 0 : index
    %7 = vector.load %arg4[%c0_5, %c0_6] : memref<2x1024xf32, #tpu.memory_space<vmem>>, vector<2x1024xf32>
    tpu.vector_store %arg4[%c0_5, %c0_6], %6 {strides = array<i32>} : memref<2x1024xf32, #tpu.memory_space<vmem>>, vector<2x1024xf32>,
    return
  }
  func.func @transform_0(%arg0: i32) -> (i32, i32) {
    %c0_i32 = arith.constant 0 : i32
    %c0_i32_0 = arith.constant 0 : i32
    return %arg0, %c0_i32 : i32, i32
  }
  func.func @transform_1(%arg0: i32) -> (i32, i32) {
    %c0_i32 = arith.constant 0 : i32
    %c0_i32_0 = arith.constant 0 : i32
    return %arg0, %c0_i32 : i32, i32
  }
  func.func @transform_2(%arg0: i32) -> (i32, i32) {
    %c0_i32 = arith.constant 0 : i32
    %c0_i32_0 = arith.constant 0 : i32
    return %arg0, %c0_i32 : i32, i32
  }
  func.func @transform_3(%arg0: i32) -> (i32, i32) {
    %c0_i32 = arith.constant 0 : i32
    %c0_i32_0 = arith.constant 0 : i32
    return %arg0, %c0_i32 : i32, i32
  }
}

</mosaic_0001>

<llo_original>
// kernel: modality_audio.1
$region0: #{modality_audio.1}
  #allocation0 [shape = 'u32[]', space=smem, size = 0x4, offset = 0x4, fixed_abs, tag = 'smem constant byte address 0x4 - core index']
  #allocation1 [shape = 'u32[144,128]{1,0:T(1,128)}', space=vmem, size = 0x12000, scoped, tag = 'internal scratch']
  %s0 = inlined_call_operand.vmem [shape: f32[2,1024], index: 0, kind: input, shape index: {}]
  %s1 = inlined_call_operand.vmem [shape: f32[2,1024], index: 1, kind: input, shape index: {}]
  %s2 = inlined_call_operand.vmem [shape: f32[2,1024], index: 2, kind: input, shape index: {}]
  %s3 = inlined_call_operand.vmem [shape: f32[2,1024], index: 3, kind: output, shape index: {}]
  %s4 = sld [smem:[#allocation0]]
  $region22: #{modality_audio.1} parent=0
    _
  %s6 = ssub.s32 1, %s4
  %s7 = scalar_select 0, %s6, %s4
  // Predicated region
  $region2: #{modality_audio.1} parent=0 // pred_check
    _
  $region3: #{modality_audio.1} parent=0 // pred_check_branch
    %9 = sbr.rel (0) target = $region5
  $region4: #{modality_audio.1} parent=0 // pred_region
    _
  $region5: #{modality_audio.1} parent=0 // pred_fallthru
    _
  // Predicated region
  $region6: #{modality_audio.1} parent=0 // pred_check
    _
  $region7: #{modality_audio.1} parent=0 // pred_check_branch
    %11 = sbr.rel (0) target = $region9
  $region8: #{modality_audio.1} parent=0 // pred_region
    _
  $region9: #{modality_audio.1} parent=0 // pred_fallthru
    _
  // Predicated region
  $region10: #{modality_audio.1} parent=0 // pred_check
    _
  $region11: #{modality_audio.1} parent=0 // pred_check_branch
    %13 = sbr.rel (0) target = $region13
  $region12: #{modality_audio.1} parent=0 // pred_region
    _
  $region13: #{modality_audio.1} parent=0 // pred_fallthru
    _
  %v14 = vld [vmem:[%s0] sm:$0xff]
  %v15 = vld [vmem:[%s0 + $0x8] sm:$0xff]
  %v16 = vld [vmem:[%s2] sm:$0xff]
  %v17 = vld [vmem:[%s2 + $0x8] sm:$0xff]
  %v18 = vsub.f32 %v14, %v16
  %v19 = vsub.f32 %v15, %v17
  %v20 = vld [vmem:[%s1] sm:$0xff]
  %v21 = vld [vmem:[%s1 + $0x8] sm:$0xff]
  %v22 = vadd.f32 %v18, %v20
  %v23 = vadd.f32 %v19, %v21
  %v24 = vmul.f32 %v22, 0.5
  %v25 = vmul.f32 %v23, 0.5
  %26 = vst [vmem:[%s3] sm:$0xff] %v24
  %27 = vst [vmem:[%s3 + $0x8] sm:$0xff] %v25
  // Predicated region
  $region14: #{modality_audio.1} parent=0 // pred_check
    _
  $region15: #{modality_audio.1} parent=0 // pred_check_branch
    %29 = sbr.rel (0) target = $region17
  $region16: #{modality_audio.1} parent=0 // pred_region
    _
  $region17: #{modality_audio.1} parent=0 // pred_fallthru
    _
  // Predicated region
  $region18: #{modality_audio.1} parent=0 // pred_check
    _
  $region19: #{modality_audio.1} parent=0 // pred_check_branch
    %31 = sbr.rel (0) target = $region21
  $region20: #{modality_audio.1} parent=0 // pred_region
    _
  $region21: #{modality_audio.1} parent=0 // pred_fallthru
    _

</llo_original>
